<compile_context>
chip_gen: v5e
topology: v5e:2x2
jax: 0.10.0
libtpu: 0.0.40
codegen_flags: <defaults>
</compile_context>

<pallas_src>
import functools

import jax
import jax.numpy as jnp
from jax.experimental import pallas as pl
from jax.experimental.pallas import tpu as pltpu


def _round_up(a: int, b: int) -> int:
    return ((a + b - 1) // b) * b


def _pick_hidden_tile(hidden: int, block_hidden: int) -> int:
    """Largest lane-aligned (multiple-of-128) divisor of `hidden` <= block_hidden."""
    if hidden % 128 != 0:
        return hidden  # not lane-aligned: keep hidden un-tiled (still correct)
    cap = max(128, min(block_hidden, hidden))
    cap -= cap % 128
    for th in range(cap, 0, -128):
        if hidden % th == 0:
            return th
    return hidden


# --------------------------------------------------------------------------
# Kernels
# --------------------------------------------------------------------------
def _ffn_resident_kernel(x_ref, w1_ref, b1_ref, w2_ref, b2_ref, o_ref, *,
                         compute_dtype):
    # x_ref : (tm, dim)      row tile
    # w1_ref: (dim, hidden)  resident, compute_dtype
    # b1_ref: (1, hidden)    resident, f32
    # w2_ref: (hidden, dim)  resident, compute_dtype
    # b2_ref: (1, dim)       resident, f32
    x = x_ref[...].astype(compute_dtype)
    # Linear(dim -> hidden): bf16 MXU operands, f32 accumulation.
    h = jnp.dot(x, w1_ref[...], preferred_element_type=jnp.float32) + b1_ref[...]
    # SiLU in f32 (sigmoid -> EUP, multiply -> VPU).
    a = h * jax.nn.sigmoid(h)
    # Linear(hidden -> dim).
    y = jnp.dot(a.astype(compute_dtype), w2_ref[...],
                preferred_element_type=jnp.float32) + b2_ref[...]
    o_ref[...] = y.astype(o_ref.dtype)


def _ffn_hidden_tiled_kernel(x_ref, w1_ref, b1_ref, w2_ref, b2_ref, o_ref,
                             acc_ref, *, compute_dtype):
    # Streams hidden in tiles of th; acc_ref is a (tm, dim) f32 accumulator.
    hi = pl.program_id(1)

    @pl.when(hi == 0)
    def _():
        acc_ref[...] = jnp.zeros_like(acc_ref)

    x = x_ref[...].astype(compute_dtype)
    h = jnp.dot(x, w1_ref[...], preferred_element_type=jnp.float32) + b1_ref[...]
    a = h * jax.nn.sigmoid(h)
    acc_ref[...] += jnp.dot(a.astype(compute_dtype), w2_ref[...],
                            preferred_element_type=jnp.float32)

    @pl.when(hi == pl.num_programs(1) - 1)
    def _():
        o_ref[...] = (acc_ref[...] + b2_ref[...]).astype(o_ref.dtype)


# --------------------------------------------------------------------------
# Wrapper
# --------------------------------------------------------------------------
def feedforward_forward(x, w1, b1, w2, b2, *,
                        block_rows: int = 256,
                        block_hidden: int = 512,
                        matmul_dtype=jnp.bfloat16,
                        resident_vmem_budget: int = 40 * 1024 * 1024):
    """FeedForward forward pass.

    x  : (..., dim)
    w1 : (dim, hidden)   (PyTorch Linear weight, pre-transposed for x @ W)
    b1 : (hidden,) or (1, hidden)
    w2 : (hidden, dim)
    b2 : (dim,) or (1, dim)
    Returns array with the same shape / dtype as x.
    """
    orig_shape = x.shape
    dim = orig_shape[-1]
    hidden = w1.shape[1]
    assert w1.shape == (dim, hidden)
    assert w2.shape == (hidden, dim)

    # Flatten leading dims into one row axis -> fat MXU tiles.
    x_flat = x.reshape(-1, dim)
    m = x_flat.shape[0]

    # MXU operands in matmul_dtype (bf16 default); biases stay f32.
    w1c = w1.astype(matmul_dtype)
    w2c = w2.astype(matmul_dtype)
    b1c = b1.reshape(1, hidden).astype(jnp.float32)
    b2c = b2.reshape(1, dim).astype(jnp.float32)

    w_isz = jnp.dtype(matmul_dtype).itemsize
    x_isz = jnp.dtype(x.dtype).itemsize

    # Row tile: sublane multiple for the narrowest operand dtype (16 for bf16).
    sublane = 16 if w_isz < 4 else 8
    tm = _round_up(min(block_rows, m), sublane)
    n_rows = pl.cdiv(m, tm)   # partial last block handled by Pallas masking

    cost = pl.CostEstimate(
        flops=4 * m * dim * hidden,          # two matmuls
        transcendentals=m * hidden,          # sigmoid
        bytes_accessed=(2 * m * dim * x_isz  # x in + y out
                        + 2 * dim * hidden * w_isz
                        + (hidden + dim) * 4))

    # VMEM cost of keeping both weight matrices resident (single-buffered) plus
    # the activation tiles and f32 intermediates.
    resident_bytes = (2 * dim * hidden * w_isz          # W1 + W2 (Buffered(1))
                      + (hidden + dim) * 4              # biases
                      + 2 * tm * dim * x_isz            # x tile (double-buffered)
                      + 2 * tm * dim * x_isz            # out tile (double-buffered)
                      + 3 * tm * hidden * 4)            # f32 h / a + headroom

    if resident_bytes <= resident_vmem_budget:
        # ---------------- resident-weight plan ----------------
        vmem_limit = min(int(resident_bytes * 1.5) + (16 << 20), 96 << 20)
        out_flat = pl.pallas_call(
            functools.partial(_ffn_resident_kernel, compute_dtype=matmul_dtype),
            out_shape=jax.ShapeDtypeStruct((m, dim), x.dtype),
            grid_spec=pltpu.PrefetchScalarGridSpec(
                num_scalar_prefetch=0,
                grid=(n_rows,),
                in_specs=[
                    pl.BlockSpec((tm, dim), lambda i: (i, 0)),
                    pl.BlockSpec((dim, hidden), lambda i: (0, 0),
                                 pipeline_mode=pl.Buffered(1)),
                    pl.BlockSpec((1, hidden), lambda i: (0, 0),
                                 pipeline_mode=pl.Buffered(1)),
                    pl.BlockSpec((hidden, dim), lambda i: (0, 0),
                                 pipeline_mode=pl.Buffered(1)),
                    pl.BlockSpec((1, dim), lambda i: (0, 0),
                                 pipeline_mode=pl.Buffered(1)),
                ],
                out_specs=pl.BlockSpec((tm, dim), lambda i: (i, 0)),
            ),
            compiler_params=pltpu.CompilerParams(
                dimension_semantics=("parallel",),
                vmem_limit_bytes=vmem_limit),
            cost_estimate=cost,
        )(x_flat, w1c, b1c, w2c, b2c)
    else:
        # ---------------- hidden-tiled streaming plan ----------------
        th = _pick_hidden_tile(hidden, block_hidden)
        n_hidden = hidden // th
        tiled_bytes = (2 * 2 * dim * th * w_isz      # W1/W2 tiles, double-buffered
                       + 2 * th * 4 + dim * 4        # bias tiles
                       + 4 * tm * dim * x_isz        # x / out tiles, double-buffered
                       + tm * dim * 4                # accumulator scratch
                       + 3 * tm * th * 4)            # f32 h / a + headroom
        vmem_limit = min(int(tiled_bytes * 1.5) + (16 << 20), 96 << 20)
        out_flat = pl.pallas_call(
            functools.partial(_ffn_hidden_tiled_kernel,
                              compute_dtype=matmul_dtype),
            out_shape=jax.ShapeDtypeStruct((m, dim), x.dtype),
            grid_spec=pltpu.PrefetchScalarGridSpec(
                num_scalar_prefetch=0,
                grid=(n_rows, n_hidden),          # hidden (reduction) axis last
                in_specs=[
                    pl.BlockSpec((tm, dim), lambda i, h: (i, 0)),
                    pl.BlockSpec((dim, th), lambda i, h: (0, h)),
                    pl.BlockSpec((1, th), lambda i, h: (0, h)),
                    pl.BlockSpec((th, dim), lambda i, h: (h, 0)),
                    pl.BlockSpec((1, dim), lambda i, h: (0, 0),
                                 pipeline_mode=pl.Buffered(1)),
                ],
                out_specs=pl.BlockSpec((tm, dim), lambda i, h: (i, 0)),
                scratch_shapes=[pltpu.VMEM((tm, dim), jnp.float32)],
            ),
            compiler_params=pltpu.CompilerParams(
                dimension_semantics=("parallel", "arbitrary"),
                vmem_limit_bytes=vmem_limit),
            cost_estimate=cost,
        )(x_flat, w1c, b1c, w2c, b2c)

    return out_flat.reshape(orig_shape)


# --------------------------------------------------------------------------
# Reference & self-test
# --------------------------------------------------------------------------
def _reference(x, w1, b1, w2, b2, *, matmul_dtype):
    """Pure-JAX reference mirroring the kernel's numerics (dropout p=0.0)."""
    cd = matmul_dtype
    prec = jax.lax.Precision.HIGHEST
    h = jnp.einsum('...d,dh->...h', x.astype(cd), w1.astype(cd),
                   preferred_element_type=jnp.float32,
                   precision=prec) + b1.reshape(-1).astype(jnp.float32)
    a = h * jax.nn.sigmoid(h)                              # SiLU in f32
    y = jnp.einsum('...h,hd->...d', a.astype(cd), w2.astype(cd),
                   preferred_element_type=jnp.float32,
                   precision=prec) + b2.reshape(-1).astype(jnp.float32)
    return y.astype(x.dtype)


if __name__ == "__main__":
    def make_case(key, x_shape, dim, hidden):
        kx, k1, kb1, k2, kb2 = jax.random.split(key, 5)
        x = jax.random.normal(kx, x_shape, dtype=jnp.float32)
        w1 = jax.random.normal(k1, (dim, hidden), dtype=jnp.float32) * (dim ** -0.5)
        b1 = jax.random.normal(kb1, (hidden,), dtype=jnp.float32) * 0.05
        w2 = jax.random.normal(k2, (hidden, dim), dtype=jnp.float32) * (hidden ** -0.5)
        b2 = jax.random.normal(kb2, (dim,), dtype=jnp.float32) * 0.05
        return x, w1, b1, w2, b2

    key = jax.random.PRNGKey(0)
    key1, key2 = jax.random.split(key)

    # ----- Case 1: small module-consistent shapes -> resident-weight path -----
    dim, hidden = 32, 64
    x, w1, b1, w2, b2 = make_case(key1, (2, 4, 32, dim), dim, hidden)

    # f32 MXU path (tight check against the f32 reference).
    y = jax.block_until_ready(
        feedforward_forward(x, w1, b1, w2, b2, matmul_dtype=jnp.float32))
    y_ref = _reference(x, w1, b1, w2, b2, matmul_dtype=jnp.float32)
    assert y.shape == x.shape
    assert jnp.allclose(y, y_ref, atol=1e-3, rtol=1e-3), "resident f32 mismatch"

    # bf16 MXU path (default; checked against a bf16-operand reference).
    y = jax.block_until_ready(feedforward_forward(x, w1, b1, w2, b2))
    y_ref = _reference(x, w1, b1, w2, b2, matmul_dtype=jnp.bfloat16)
    assert jnp.allclose(y, y_ref, atol=5e-3, rtol=5e-3), "resident bf16 mismatch"

    # ----- Case 2: hidden-tiled streaming path (forced), partial row tile -----
    dim, hidden = 128, 512
    x, w1, b1, w2, b2 = make_case(key2, (3, 50, dim), dim, hidden)  # 150 rows

    y = jax.block_until_ready(
        feedforward_forward(x, w1, b1, w2, b2, matmul_dtype=jnp.float32,
                            block_hidden=128, resident_vmem_budget=0))
    y_ref = _reference(x, w1, b1, w2, b2, matmul_dtype=jnp.float32)
    assert y.shape == x.shape
    assert jnp.allclose(y, y_ref, atol=1e-3, rtol=1e-3), "tiled f32 mismatch"

    y = jax.block_until_ready(
        feedforward_forward(x, w1, b1, w2, b2,
                            block_hidden=128, resident_vmem_budget=0))
    y_ref = _reference(x, w1, b1, w2, b2, matmul_dtype=jnp.bfloat16)
    assert jnp.allclose(y, y_ref, atol=5e-3, rtol=5e-3), "tiled bf16 mismatch"

    print("KERNEL_OK")
</pallas_src>

<mosaic_0001>
module attributes {stable_mosaic.version = 11 : i64} {
  func.func @_ffn_resident_kernel(%arg0: i32, %arg1: memref<256x32xf32, #tpu.memory_space<vmem>>, %arg2: memref<32x64xf32, #tpu.memory_space<vmem>>, %arg3: memref<1x64xf32, #tpu.memory_space<vmem>>, %arg4: memref<64x32xf32, #tpu.memory_space<vmem>>, %arg5: memref<1x32xf32, #tpu.memory_space<vmem>>, %arg6: memref<256x32xf32, #tpu.memory_space<vmem>>) attributes {dimension_semantics = [#tpu.dimension_semantics<parallel>], iteration_bounds = array<i64: 1>, scalar_prefetch = 0 : i64, scratch_operands = 0 : i64, tpu.core_type = #tpu.core_type<tc>, window_params = [{transform_indices = @transform_0, window_bounds = array<i64: 256, 32>}, {pipeline_mode = #tpu.pipeline_mode<synchronous>, transform_indices = @transform_1, window_bounds = array<i64: 32, 64>}, {pipeline_mode = #tpu.pipeline_mode<synchronous>, transform_indices = @transform_2, window_bounds = array<i64: 1, 64>}, {pipeline_mode = #tpu.pipeline_mode<synchronous>, transform_indices = @transform_3, window_bounds = array<i64: 64, 32>}, {pipeline_mode = #tpu.pipeline_mode<synchronous>, transform_indices = @transform_4, window_bounds = array<i64: 1, 32>}, {transform_indices = @transform_5, window_bounds = array<i64: 256, 32>}]} {
    %c0 = arith.constant 0 : index
    %c0_0 = arith.constant 0 : index
    %0 = vector.load %arg1[%c0, %c0_0] : memref<256x32xf32, #tpu.memory_space<vmem>>, vector<256x32xf32>
    %c0_1 = arith.constant 0 : index
    %c0_2 = arith.constant 0 : index
    %1 = vector.load %arg2[%c0_1, %c0_2] : memref<32x64xf32, #tpu.memory_space<vmem>>, vector<32x64xf32>
    %cst = arith.constant dense<0.000000e+00> : vector<256x64xf32>
    %2 = tpu.matmul %0, %1, %cst {dimension_numbers = #tpu.dot_dimension_numbers<[1], [0], [0], [1], [0, 0, 1, 1], [], []>} : vector<256x32xf32>, vector<32x64xf32>, vector<256x64xf32> -> vector<256x64xf32>
    %c0_3 = arith.constant 0 : index
    %c0_4 = arith.constant 0 : index
    %3 = vector.load %arg3[%c0_3, %c0_4] : memref<1x64xf32, #tpu.memory_space<vmem>>, vector<1x64xf32>
    %4 = vector.broadcast %3 : vector<1x64xf32> to vector<256x64xf32>
    %5 = arith.addf %2, %4 : vector<256x64xf32>
    %6 = arith.negf %5 : vector<256x64xf32>
    %7 = math.exp %6 : vector<256x64xf32>
    %cst_5 = arith.constant 1.000000e+00 : f32
    %8 = vector.broadcast %cst_5 : f32 to vector<256x64xf32>
    %9 = arith.addf %8, %7 : vector<256x64xf32>
    %10 = arith.divf %8, %9 : vector<256x64xf32>
    %11 = arith.mulf %5, %10 : vector<256x64xf32>
    %c0_6 = arith.constant 0 : index
    %c0_7 = arith.constant 0 : index
    %12 = vector.load %arg4[%c0_6, %c0_7] : memref<64x32xf32, #tpu.memory_space<vmem>>, vector<64x32xf32>
    %cst_8 = arith.constant dense<0.000000e+00> : vector<256x32xf32>
    %13 = tpu.matmul %11, %12, %cst_8 {dimension_numbers = #tpu.dot_dimension_numbers<[1], [0], [0], [1], [0, 0, 1, 1], [], []>} : vector<256x64xf32>, vector<64x32xf32>, vector<256x32xf32> -> vector<256x32xf32>
    %c0_9 = arith.constant 0 : index
    %c0_10 = arith.constant 0 : index
    %14 = vector.load %arg5[%c0_9, %c0_10] : memref<1x32xf32, #tpu.memory_space<vmem>>, vector<1x32xf32>
    %15 = vector.broadcast %14 : vector<1x32xf32> to vector<256x32xf32>
    %16 = arith.addf %13, %15 : vector<256x32xf32>
    %c0_11 = arith.constant 0 : index
    %c0_12 = arith.constant 0 : index
    %17 = vector.load %arg6[%c0_11, %c0_12] : memref<256x32xf32, #tpu.memory_space<vmem>>, vector<256x32xf32>
    tpu.vector_store %arg6[%c0_11, %c0_12], %16 {strides = array<i32>} : memref<256x32xf32, #tpu.memory_space<vmem>>, vector<256x32xf32>,
    return
  }
  func.func @transform_0(%arg0: i32) -> (i32, i32) {
    %c0_i32 = arith.constant 0 : i32
    %c0_i32_0 = arith.constant 0 : i32
    return %arg0, %c0_i32 : i32, i32
  }
  func.func @transform_1(%arg0: i32) -> (i32, i32) {
    %c0_i32 = arith.constant 0 : i32
    %c0_i32_0 = arith.constant 0 : i32
    %c0_i32_1 = arith.constant 0 : i32
    return %c0_i32, %c0_i32_0 : i32, i32
  }
  func.func @transform_2(%arg0: i32) -> (i32, i32) {
    %c0_i32 = arith.constant 0 : i32
    %c0_i32_0 = arith.constant 0 : i32
    %c0_i32_1 = arith.constant 0 : i32
    return %c0_i32, %c0_i32_0 : i32, i32
  }
  func.func @transform_3(%arg0: i32) -> (i32, i32) {
    %c0_i32 = arith.constant 0 : i32
    %c0_i32_0 = arith.constant 0 : i32
    %c0_i32_1 = arith.constant 0 : i32
    return %c0_i32, %c0_i32_0 : i32, i32
  }
  func.func @transform_4(%arg0: i32) -> (i32, i32) {
    %c0_i32 = arith.constant 0 : i32
    %c0_i32_0 = arith.constant 0 : i32
    %c0_i32_1 = arith.constant 0 : i32
    return %c0_i32, %c0_i32_0 : i32, i32
  }
  func.func @transform_5(%arg0: i32) -> (i32, i32) {
    %c0_i32 = arith.constant 0 : i32
    %c0_i32_0 = arith.constant 0 : i32
    return %arg0, %c0_i32 : i32, i32
  }
}

</mosaic_0001>

<llo_original>
// kernel: tpu_custom_call.1
$region0: #{tpu_custom_call.1}
  #allocation0 [shape = 'u32[]', space=smem, size = 0x4, offset = 0x4, fixed_abs, tag = 'smem constant byte address 0x4 - core index']
  #allocation1 [shape = 'u32[72,128]{1,0:T(1,128)}', space=vmem, size = 0x9000, scoped, tag = 'internal scratch']
  %s0 = inlined_call_operand.vmem [shape: f32[256,32], index: 0, kind: input, shape index: {}]
  %s1 = inlined_call_operand.vmem [shape: f32[32,64], index: 1, kind: input, shape index: {}]
  %s2 = inlined_call_operand.vmem [shape: f32[1,64], index: 2, kind: input, shape index: {}]
  %s3 = inlined_call_operand.vmem [shape: f32[64,32], index: 3, kind: input, shape index: {}]
  %s4 = inlined_call_operand.vmem [shape: f32[1,32], index: 4, kind: input, shape index: {}]
  %s5 = inlined_call_operand.vmem [shape: f32[256,32], index: 5, kind: output, shape index: {}]
  %s6 = sld [smem:[#allocation0]]
  $region30: #{tpu_custom_call.1} parent=0
    _
  %s8 = ssub.s32 1, %s6
  %s9 = scalar_select 0, %s8, %s6
  // Predicated region
  $region2: #{tpu_custom_call.1} parent=0 // pred_check
    _
  $region3: #{tpu_custom_call.1} parent=0 // pred_check_branch
    %11 = sbr.rel (0) target = $region5
  $region4: #{tpu_custom_call.1} parent=0 // pred_region
    _
  $region5: #{tpu_custom_call.1} parent=0 // pred_fallthru
    _
  // Predicated region
  $region6: #{tpu_custom_call.1} parent=0 // pred_check
    _
  $region7: #{tpu_custom_call.1} parent=0 // pred_check_branch
    %13 = sbr.rel (0) target = $region9
  $region8: #{tpu_custom_call.1} parent=0 // pred_region
    _
  $region9: #{tpu_custom_call.1} parent=0 // pred_fallthru
    _
  // Predicated region
  $region10: #{tpu_custom_call.1} parent=0 // pred_check
    _
  $region11: #{tpu_custom_call.1} parent=0 // pred_check_branch
    %15 = sbr.rel (0) target = $region13
  $region12: #{tpu_custom_call.1} parent=0 // pred_region
    _
  $region13: #{tpu_custom_call.1} parent=0 // pred_fallthru
    _
  // Predicated region
  $region14: #{tpu_custom_call.1} parent=0 // pred_check
    _
  $region15: #{tpu_custom_call.1} parent=0 // pred_check_branch
    %17 = sbr.rel (0) target = $region17
  $region16: #{tpu_custom_call.1} parent=0 // pred_region
    _
  $region17: #{tpu_custom_call.1} parent=0 // pred_fallthru
    _
  // Predicated region
  $region18: #{tpu_custom_call.1} parent=0 // pred_check
    _
  $region19: #{tpu_custom_call.1} parent=0 // pred_check_branch
    %19 = sbr.rel (0) target = $region21
  $region20: #{tpu_custom_call.1} parent=0 // pred_region
    _
  $region21: #{tpu_custom_call.1} parent=0 // pred_fallthru
    _
  %v20 = vld [vmem:[%s0] sm:$0xff]
  %v21 = vld [vmem:[%s0 + $0x8] sm:$0xff]
  %v22 = vld [vmem:[%s0 + $0x10] sm:$0xff]
  %v23 = vld [vmem:[%s0 + $0x18] sm:$0xff]
  %v24 = vld [vmem:[%s0 + $0x20] sm:$0xff]
  %v25 = vld [vmem:[%s0 + $0x28] sm:$0xff]
  %v26 = vld [vmem:[%s0 + $0x30] sm:$0xff]
  %v27 = vld [vmem:[%s0 + $0x38] sm:$0xff]
  %v28 = vld [vmem:[%s0 + $0x40] sm:$0xff]
  %v29 = vld [vmem:[%s0 + $0x48] sm:$0xff]
  %v30 = vld [vmem:[%s0 + $0x50] sm:$0xff]
  %v31 = vld [vmem:[%s0 + $0x58] sm:$0xff]
  %v32 = vld [vmem:[%s0 + $0x60] sm:$0xff]
  %v33 = vld [vmem:[%s0 + $0x68] sm:$0xff]
  %v34 = vld [vmem:[%s0 + $0x70] sm:$0xff]
  %v35 = vld [vmem:[%s0 + $0x78] sm:$0xff]
  %v36 = vld [vmem:[%s0 + $0x80] sm:$0xff]
  %v37 = vld [vmem:[%s0 + $0x88] sm:$0xff]
  %v38 = vld [vmem:[%s0 + $0x90] sm:$0xff]
  %v39 = vld [vmem:[%s0 + $0x98] sm:$0xff]
  %v40 = vld [vmem:[%s0 + $0xa0] sm:$0xff]
  %v41 = vld [vmem:[%s0 + $0xa8] sm:$0xff]
  %v42 = vld [vmem:[%s0 + $0xb0] sm:$0xff]
  %v43 = vld [vmem:[%s0 + $0xb8] sm:$0xff]
  %v44 = vld [vmem:[%s0 + $0xc0] sm:$0xff]
  %v45 = vld [vmem:[%s0 + $0xc8] sm:$0xff]
  %v46 = vld [vmem:[%s0 + $0xd0] sm:$0xff]
  %v47 = vld [vmem:[%s0 + $0xd8] sm:$0xff]
  %v48 = vld [vmem:[%s0 + $0xe0] sm:$0xff]
  %v49 = vld [vmem:[%s0 + $0xe8] sm:$0xff]
  %v50 = vld [vmem:[%s0 + $0xf0] sm:$0xff]
  %v51 = vld [vmem:[%s0 + $0xf8] sm:$0xff]
  %v52 = vld [vmem:[%s1] sm:$0xff]
  %v53 = vld [vmem:[%s1 + $0x8] sm:$0xff]
  %v54 = vld [vmem:[%s1 + $0x10] sm:$0xff]
  %v55 = vld [vmem:[%s1 + $0x18] sm:$0xff]
  %v56 = vld [vmem:[%s2] sm:$0x1]
  %v58 = vperm.slane %v56, 0
  %vm60 = vcmask 261120
  %v62 = vsel %vm60, %v20, 0
  %v65 = vsel %vm60, %v21, 0
  %v68 = vsel %vm60, %v22, 0
  %v71 = vsel %vm60, %v23, 0
  %v74 = vsel %vm60, %v24, 0
  %v77 = vsel %vm60, %v25, 0
  %v80 = vsel %vm60, %v26, 0
  %v83 = vsel %vm60, %v27, 0
  %v86 = vsel %vm60, %v28, 0
  %v89 = vsel %vm60, %v29, 0
  %v92 = vsel %vm60, %v30, 0
  %v95 = vsel %vm60, %v31, 0
  %v98 = vsel %vm60, %v32, 0
  %v101 = vsel %vm60, %v33, 0
  %v104 = vsel %vm60, %v34, 0
  %v107 = vsel %vm60, %v35, 0
  %v110 = vsel %vm60, %v36, 0
  %v113 = vsel %vm60, %v37, 0
  %v116 = vsel %vm60, %v38, 0
  %v119 = vsel %vm60, %v39, 0
  %v122 = vsel %vm60, %v40, 0
  %v125 = vsel %vm60, %v41, 0
  %v128 = vsel %vm60, %v42, 0
  %v131 = vsel %vm60, %v43, 0
  %v134 = vsel %vm60, %v44, 0
  %v137 = vsel %vm60, %v45, 0
  %v140 = vsel %vm60, %v46, 0
  %v143 = vsel %vm60, %v47, 0
  %v146 = vsel %vm60, %v48, 0
  %v149 = vsel %vm60, %v49, 0
  %v152 = vsel %vm60, %v50, 0
  %v155 = vsel %vm60, %v51, 0
  %157 = vmatpush.msra.mxu0 0.0
  %158 = vmatpush.msra.mxu0 0.0
  %159 = vmatpush.msra.mxu0 0.0
  %160 = vmatpush.msra.mxu0 0.0
  %161 = vmatpush.msra.mxu0 0.0
  %162 = vmatpush.msra.mxu0 0.0
  %163 = vmatpush.msra.mxu0 0.0
  %164 = vmatpush.msra.mxu0 0.0
  %165 = vmatpush.msra.mxu0 0.0
  %166 = vmatpush.msra.mxu0 0.0
  %167 = vmatpush.msra.mxu0 0.0
  %168 = vmatpush.msra.mxu0 0.0
  %169 = vmatpush.msra.mxu0 %v55
  %170 = vmatpush.msra.mxu0 %v54
  %171 = vmatpush.msra.mxu0 %v53
  %172 = vmatpush.msra.mxu0 %v52
  %173 = vmatmul.f32.gmra.mxu0 %v62
  %v174 = vpop.f32.mrf.mxu0
  %v175 = vadd.f32 %v58, %v174
  %176 = vmatmul.f32.gmra.mxu0 %v65
  %v177 = vpop.f32.mrf.mxu0
  %v178 = vadd.f32 %v58, %v177
  %179 = vmatmul.f32.gmra.mxu0 %v68
  %v180 = vpop.f32.mrf.mxu0
  %v181 = vadd.f32 %v58, %v180
  %182 = vmatmul.f32.gmra.mxu0 %v71
  %v183 = vpop.f32.mrf.mxu0
  %v184 = vadd.f32 %v58, %v183
  %185 = vmatmul.f32.gmra.mxu0 %v74
  %v186 = vpop.f32.mrf.mxu0
  %v187 = vadd.f32 %v58, %v186
  %188 = vmatmul.f32.gmra.mxu0 %v77
  %v189 = vpop.f32.mrf.mxu0
  %v190 = vadd.f32 %v58, %v189
  %191 = vmatmul.f32.gmra.mxu0 %v80
  %v192 = vpop.f32.mrf.mxu0
  %v193 = vadd.f32 %v58, %v192
  %194 = vmatmul.f32.gmra.mxu0 %v83
  %v195 = vpop.f32.mrf.mxu0
  %v196 = vadd.f32 %v58, %v195
  %197 = vmatmul.f32.gmra.mxu0 %v86
  %v198 = vpop.f32.mrf.mxu0
  %v199 = vadd.f32 %v58, %v198
  %200 = vmatmul.f32.gmra.mxu0 %v89
  %v201 = vpop.f32.mrf.mxu0
  %v202 = vadd.f32 %v58, %v201
  %203 = vmatmul.f32.gmra.mxu0 %v92
  %v204 = vpop.f32.mrf.mxu0
  %v205 = vadd.f32 %v58, %v204
  %206 = vmatmul.f32.gmra.mxu0 %v95
  %v207 = vpop.f32.mrf.mxu0
  %v208 = vadd.f32 %v58, %v207
  %209 = vmatmul.f32.gmra.mxu0 %v98
  %v210 = vpop.f32.mrf.mxu0
  %v211 = vadd.f32 %v58, %v210
  %212 = vmatmul.f32.gmra.mxu0 %v101
  %v213 = vpop.f32.mrf.mxu0
  %v214 = vadd.f32 %v58, %v213
  %215 = vmatmul.f32.gmra.mxu0 %v104
  %v216 = vpop.f32.mrf.mxu0
  %v217 = vadd.f32 %v58, %v216
  %218 = vmatmul.f32.gmra.mxu0 %v107
  %v219 = vpop.f32.mrf.mxu0
  %v220 = vadd.f32 %v58, %v219
  %221 = vmatmul.f32.gmra.mxu0 %v110
  %v222 = vpop.f32.mrf.mxu0
  %v223 = vadd.f32 %v58, %v222
  %224 = vmatmul.f32.gmra.mxu0 %v113
  %v225 = vpop.f32.mrf.mxu0
  %v226 = vadd.f32 %v58, %v225
  %227 = vmatmul.f32.gmra.mxu0 %v116
  %v228 = vpop.f32.mrf.mxu0
  %v229 = vadd.f32 %v58, %v228
  %230 = vmatmul.f32.gmra.mxu0 %v119
  %v231 = vpop.f32.mrf.mxu0
  %v232 = vadd.f32 %v58, %v231
  %233 = vmatmul.f32.gmra.mxu0 %v122
  %v234 = vpop.f32.mrf.mxu0
  %v235 = vadd.f32 %v58, %v234
  %236 = vmatmul.f32.gmra.mxu0 %v125
  %v237 = vpop.f32.mrf.mxu0
  %v238 = vadd.f32 %v58, %v237
  %239 = vmatmul.f32.gmra.mxu0 %v128
  %v240 = vpop.f32.mrf.mxu0
  %v241 = vadd.f32 %v58, %v240
  %242 = vmatmul.f32.gmra.mxu0 %v131
  %v243 = vpop.f32.mrf.mxu0
  %v244 = vadd.f32 %v58, %v243
  %245 = vmatmul.f32.gmra.mxu0 %v134
  %v246 = vpop.f32.mrf.mxu0
  %v247 = vadd.f32 %v58, %v246
  %248 = vmatmul.f32.gmra.mxu0 %v137
  %v249 = vpop.f32.mrf.mxu0
  %v250 = vadd.f32 %v58, %v249
  %251 = vmatmul.f32.gmra.mxu0 %v140
  %v252 = vpop.f32.mrf.mxu0
  %v253 = vadd.f32 %v58, %v252
  %254 = vmatmul.f32.gmra.mxu0 %v143
  %v255 = vpop.f32.mrf.mxu0
  %v256 = vadd.f32 %v58, %v255
  %257 = vmatmul.f32.gmra.mxu0 %v146
  %v258 = vpop.f32.mrf.mxu0
  %v259 = vadd.f32 %v58, %v258
  %260 = vmatmul.f32.gmra.mxu0 %v149
  %v261 = vpop.f32.mrf.mxu0
  %v262 = vadd.f32 %v58, %v261
  %263 = vmatmul.f32.gmra.mxu0 %v152
  %v264 = vpop.f32.mrf.mxu0
  %v265 = vadd.f32 %v58, %v264
  %266 = vmatmul.f32.gmra.mxu0 %v155
  %v267 = vpop.f32.mrf.mxu0
  %v268 = vadd.f32 %v58, %v267
  %269 = vdwg.mxu0
  %v270 = vxor.u32 %v175, 2147483648
  %v271 = vxor.u32 %v178, 2147483648
  %v272 = vxor.u32 %v181, 2147483648
  %v273 = vxor.u32 %v184, 2147483648
  %v274 = vxor.u32 %v187, 2147483648
  %v275 = vxor.u32 %v190, 2147483648
  %v276 = vxor.u32 %v193, 2147483648
  %v277 = vxor.u32 %v196, 2147483648
  %v278 = vxor.u32 %v199, 2147483648
  %v279 = vxor.u32 %v202, 2147483648
  %v280 = vxor.u32 %v205, 2147483648
  %v281 = vxor.u32 %v208, 2147483648
  %v282 = vxor.u32 %v211, 2147483648
  %v283 = vxor.u32 %v214, 2147483648
  %v284 = vxor.u32 %v217, 2147483648
  %v285 = vxor.u32 %v220, 2147483648
  %v286 = vxor.u32 %v223, 2147483648
  %v287 = vxor.u32 %v226, 2147483648
  %v288 = vxor.u32 %v229, 2147483648
  %v289 = vxor.u32 %v232, 2147483648
  %v290 = vxor.u32 %v235, 2147483648
  %v291 = vxor.u32 %v238, 2147483648
  %v292 = vxor.u32 %v241, 2147483648
  %v293 = vxor.u32 %v244, 2147483648
  %v294 = vxor.u32 %v247, 2147483648
  %v295 = vxor.u32 %v250, 2147483648
  %v296 = vxor.u32 %v253, 2147483648
  %v297 = vxor.u32 %v256, 2147483648
  %v298 = vxor.u32 %v259, 2147483648
  %v299 = vxor.u32 %v262, 2147483648
  %v300 = vxor.u32 %v265, 2147483648
  %v301 = vxor.u32 %v268, 2147483648
  %v302 = vmul.f32 %v270, 1.442695
  %v303 = vpow.pop %v302
  %v304 = vmul.f32 %v271, 1.442695
  %v305 = vpow.pop %v304
  %v306 = vmul.f32 %v272, 1.442695
  %v307 = vpow.pop %v306
  %v308 = vmul.f32 %v273, 1.442695
  %v309 = vpow.pop %v308
  %v310 = vmul.f32 %v274, 1.442695
  %v311 = vpow.pop %v310
  %v312 = vmul.f32 %v275, 1.442695
  %v313 = vpow.pop %v312
  %v314 = vmul.f32 %v276, 1.442695
  %v315 = vpow.pop %v314
  %v316 = vmul.f32 %v277, 1.442695
  %v317 = vpow.pop %v316
  %v318 = vmul.f32 %v278, 1.442695
  %v319 = vpow.pop %v318
  %v320 = vmul.f32 %v279, 1.442695
  %v321 = vpow.pop %v320
  %v322 = vmul.f32 %v280, 1.442695
  %v323 = vpow.pop %v322
  %v324 = vmul.f32 %v281, 1.442695
  %v325 = vpow.pop %v324
  %v326 = vmul.f32 %v282, 1.442695
  %v327 = vpow.pop %v326
  %v328 = vmul.f32 %v283, 1.442695
  %v329 = vpow.pop %v328
  %v330 = vmul.f32 %v284, 1.442695
  %v331 = vpow.pop %v330
  %v332 = vmul.f32 %v285, 1.442695
  %v333 = vpow.pop %v332
  %v334 = vmul.f32 %v286, 1.442695
  %v335 = vpow.pop %v334
  %v336 = vmul.f32 %v287, 1.442695
  %v337 = vpow.pop %v336
  %v338 = vmul.f32 %v288, 1.442695
  %v339 = vpow.pop %v338
  %v340 = vmul.f32 %v289, 1.442695
  %v341 = vpow.pop %v340
  %v342 = vmul.f32 %v290, 1.442695
  %v343 = vpow.pop %v342
  %v344 = vmul.f32 %v291, 1.442695
  %v345 = vpow.pop %v344
  %v346 = vmul.f32 %v292, 1.442695
  %v347 = vpow.pop %v346
  %v348 = vmul.f32 %v293, 1.442695
  %v349 = vpow.pop %v348
  %v350 = vmul.f32 %v294, 1.442695
  %v351 = vpow.pop %v350
  %v352 = vmul.f32 %v295, 1.442695
  %v353 = vpow.pop %v352
  %v354 = vmul.f32 %v296, 1.442695
  %v355 = vpow.pop %v354
  %v356 = vmul.f32 %v297, 1.442695
  %v357 = vpow.pop %v356
  %v358 = vmul.f32 %v298, 1.442695
  %v359 = vpow.pop %v358
  %v360 = vmul.f32 %v299, 1.442695
  %v361 = vpow.pop %v360
  %v362 = vmul.f32 %v300, 1.442695
  %v363 = vpow.pop %v362
  %v364 = vmul.f32 %v301, 1.442695
  %v365 = vpow.pop %v364
  %v366 = vadd.f32 %v303, 1.0
  %v367 = vadd.f32 %v305, 1.0
  %v368 = vadd.f32 %v307, 1.0
  %v369 = vadd.f32 %v309, 1.0
  %v370 = vadd.f32 %v311, 1.0
  %v371 = vadd.f32 %v313, 1.0
  %v372 = vadd.f32 %v315, 1.0
  %v373 = vadd.f32 %v317, 1.0
  %v374 = vadd.f32 %v319, 1.0
  %v375 = vadd.f32 %v321, 1.0
  %v376 = vadd.f32 %v323, 1.0
  %v377 = vadd.f32 %v325, 1.0
  %v378 = vadd.f32 %v327, 1.0
  %v379 = vadd.f32 %v329, 1.0
  %v380 = vadd.f32 %v331, 1.0
  %v381 = vadd.f32 %v333, 1.0
  %v382 = vadd.f32 %v335, 1.0
  %v383 = vadd.f32 %v337, 1.0
  %v384 = vadd.f32 %v339, 1.0
  %v385 = vadd.f32 %v341, 1.0
  %v386 = vadd.f32 %v343, 1.0
  %v387 = vadd.f32 %v345, 1.0
  %v388 = vadd.f32 %v347, 1.0
  %v389 = vadd.f32 %v349, 1.0
  %v390 = vadd.f32 %v351, 1.0
  %v391 = vadd.f32 %v353, 1.0
  %v392 = vadd.f32 %v355, 1.0
  %v393 = vadd.f32 %v357, 1.0
  %v394 = vadd.f32 %v359, 1.0
  %v395 = vadd.f32 %v361, 1.0
  %v396 = vadd.f32 %v363, 1.0
  %v397 = vadd.f32 %v365, 1.0
  %v398 = vrcp.pop %v366
  %v399 = vmul.f32 %v366, %v398
  %v400 = vsub.f32 1.0, %v399
  %v401 = vmul.f32 %v398, %v400
  %v402 = vadd.f32 %v398, %v401
  %vm403 = vweird.f32 %v366
  %vm404 = vweird.f32 %v398
  %vm405 = vmor %vm403, %vm404
  %v406 = vsel %vm405, %v398, %v402
  %v407 = vand.u32 2147483647, %v366
  %vm408 = vcmp.eq.f32.partialorder %v407, 8.507059e+37
  %v409 = vand.u32 %v366, 2147483648
  %v410 = vor.u32 1.1754944e-38, %v409
  %v411 = vsel %vm408, %v410, %v406
  %v412 = vmul.f32 1.0, %v411
  %v413 = vrcp.pop %v367
  %v414 = vmul.f32 %v367, %v413
  %v415 = vsub.f32 1.0, %v414
  %v416 = vmul.f32 %v413, %v415
  %v417 = vadd.f32 %v413, %v416
  %vm418 = vweird.f32 %v367
  %vm419 = vweird.f32 %v413
  %vm420 = vmor %vm418, %vm419
  %v421 = vsel %vm420, %v413, %v417
  %v422 = vand.u32 2147483647, %v367
  %vm423 = vcmp.eq.f32.partialorder %v422, 8.507059e+37
  %v424 = vand.u32 %v367, 2147483648
  %v425 = vor.u32 1.1754944e-38, %v424
  %v426 = vsel %vm423, %v425, %v421
  %v427 = vmul.f32 1.0, %v426
  %v428 = vrcp.pop %v368
  %v429 = vmul.f32 %v368, %v428
  %v430 = vsub.f32 1.0, %v429
  %v431 = vmul.f32 %v428, %v430
  %v432 = vadd.f32 %v428, %v431
  %vm433 = vweird.f32 %v368
  %vm434 = vweird.f32 %v428
  %vm435 = vmor %vm433, %vm434
  %v436 = vsel %vm435, %v428, %v432
  %v437 = vand.u32 2147483647, %v368
  %vm438 = vcmp.eq.f32.partialorder %v437, 8.507059e+37
  %v439 = vand.u32 %v368, 2147483648
  %v440 = vor.u32 1.1754944e-38, %v439
  %v441 = vsel %vm438, %v440, %v436
  %v442 = vmul.f32 1.0, %v441
  %v443 = vrcp.pop %v369
  %v444 = vmul.f32 %v369, %v443
  %v445 = vsub.f32 1.0, %v444
  %v446 = vmul.f32 %v443, %v445
  %v447 = vadd.f32 %v443, %v446
  %vm448 = vweird.f32 %v369
  %vm449 = vweird.f32 %v443
  %vm450 = vmor %vm448, %vm449
  %v451 = vsel %vm450, %v443, %v447
  %v452 = vand.u32 2147483647, %v369
  %vm453 = vcmp.eq.f32.partialorder %v452, 8.507059e+37
  %v454 = vand.u32 %v369, 2147483648
  %v455 = vor.u32 1.1754944e-38, %v454
  %v456 = vsel %vm453, %v455, %v451
  %v457 = vmul.f32 1.0, %v456
  %v458 = vrcp.pop %v370
  %v459 = vmul.f32 %v370, %v458
  %v460 = vsub.f32 1.0, %v459
  %v461 = vmul.f32 %v458, %v460
  %v462 = vadd.f32 %v458, %v461
  %vm463 = vweird.f32 %v370
  %vm464 = vweird.f32 %v458
  %vm465 = vmor %vm463, %vm464
  %v466 = vsel %vm465, %v458, %v462
  %v467 = vand.u32 2147483647, %v370
  %vm468 = vcmp.eq.f32.partialorder %v467, 8.507059e+37
  %v469 = vand.u32 %v370, 2147483648
  %v470 = vor.u32 1.1754944e-38, %v469
  %v471 = vsel %vm468, %v470, %v466
  %v472 = vmul.f32 1.0, %v471
  %v473 = vrcp.pop %v371
  %v474 = vmul.f32 %v371, %v473
  %v475 = vsub.f32 1.0, %v474
  %v476 = vmul.f32 %v473, %v475
  %v477 = vadd.f32 %v473, %v476
  %vm478 = vweird.f32 %v371
  %vm479 = vweird.f32 %v473
  %vm480 = vmor %vm478, %vm479
  %v481 = vsel %vm480, %v473, %v477
  %v482 = vand.u32 2147483647, %v371
  %vm483 = vcmp.eq.f32.partialorder %v482, 8.507059e+37
  %v484 = vand.u32 %v371, 2147483648
  %v485 = vor.u32 1.1754944e-38, %v484
  %v486 = vsel %vm483, %v485, %v481
  %v487 = vmul.f32 1.0, %v486
  %v488 = vrcp.pop %v372
  %v489 = vmul.f32 %v372, %v488
  %v490 = vsub.f32 1.0, %v489
  %v491 = vmul.f32 %v488, %v490
  %v492 = vadd.f32 %v488, %v491
  %vm493 = vweird.f32 %v372
  %vm494 = vweird.f32 %v488
  %vm495 = vmor %vm493, %vm494
  %v496 = vsel %vm495, %v488, %v492
  %v497 = vand.u32 2147483647, %v372
  %vm498 = vcmp.eq.f32.partialorder %v497, 8.507059e+37
  %v499 = vand.u32 %v372, 2147483648
  %v500 = vor.u32 1.1754944e-38, %v499
  %v501 = vsel %vm498, %v500, %v496
  %v502 = vmul.f32 1.0, %v501
  %v503 = vrcp.pop %v373
  %v504 = vmul.f32 %v373, %v503
  %v505 = vsub.f32 1.0, %v504
  %v506 = vmul.f32 %v503, %v505
  %v507 = vadd.f32 %v503, %v506
  %vm508 = vweird.f32 %v373
  %vm509 = vweird.f32 %v503
  %vm510 = vmor %vm508, %vm509
  %v511 = vsel %vm510, %v503, %v507
  %v512 = vand.u32 2147483647, %v373
  %vm513 = vcmp.eq.f32.partialorder %v512, 8.507059e+37
  %v514 = vand.u32 %v373, 2147483648
  %v515 = vor.u32 1.1754944e-38, %v514
  %v516 = vsel %vm513, %v515, %v511
  %v517 = vmul.f32 1.0, %v516
  %v518 = vrcp.pop %v374
  %v519 = vmul.f32 %v374, %v518
  %v520 = vsub.f32 1.0, %v519
  %v521 = vmul.f32 %v518, %v520
  %v522 = vadd.f32 %v518, %v521
  %vm523 = vweird.f32 %v374
  %vm524 = vweird.f32 %v518
  %vm525 = vmor %vm523, %vm524
  %v526 = vsel %vm525, %v518, %v522
  %v527 = vand.u32 2147483647, %v374
  %vm528 = vcmp.eq.f32.partialorder %v527, 8.507059e+37
  %v529 = vand.u32 %v374, 2147483648
  %v530 = vor.u32 1.1754944e-38, %v529
  %v531 = vsel %vm528, %v530, %v526
  %v532 = vmul.f32 1.0, %v531
  %v533 = vrcp.pop %v375
  %v534 = vmul.f32 %v375, %v533
  %v535 = vsub.f32 1.0, %v534
  %v536 = vmul.f32 %v533, %v535
  %v537 = vadd.f32 %v533, %v536
  %vm538 = vweird.f32 %v375
  %vm539 = vweird.f32 %v533
  %vm540 = vmor %vm538, %vm539
  %v541 = vsel %vm540, %v533, %v537
  %v542 = vand.u32 2147483647, %v375
  %vm543 = vcmp.eq.f32.partialorder %v542, 8.507059e+37
  %v544 = vand.u32 %v375, 2147483648
  %v545 = vor.u32 1.1754944e-38, %v544
  %v546 = vsel %vm543, %v545, %v541
  %v547 = vmul.f32 1.0, %v546
  %v548 = vrcp.pop %v376
  %v549 = vmul.f32 %v376, %v548
  %v550 = vsub.f32 1.0, %v549
  %v551 = vmul.f32 %v548, %v550
  %v552 = vadd.f32 %v548, %v551
  %vm553 = vweird.f32 %v376
  %vm554 = vweird.f32 %v548
  %vm555 = vmor %vm553, %vm554
  %v556 = vsel %vm555, %v548, %v552
  %v557 = vand.u32 2147483647, %v376
  %vm558 = vcmp.eq.f32.partialorder %v557, 8.507059e+37
  %v559 = vand.u32 %v376, 2147483648
  %v560 = vor.u32 1.1754944e-38, %v559
  %v561 = vsel %vm558, %v560, %v556
  %v562 = vmul.f32 1.0, %v561
  %v563 = vrcp.pop %v377
  %v564 = vmul.f32 %v377, %v563
  %v565 = vsub.f32 1.0, %v564
  %v566 = vmul.f32 %v563, %v565
  %v567 = vadd.f32 %v563, %v566
  %vm568 = vweird.f32 %v377
  %vm569 = vweird.f32 %v563
  %vm570 = vmor %vm568, %vm569
  %v571 = vsel %vm570, %v563, %v567
  %v572 = vand.u32 2147483647, %v377
  %vm573 = vcmp.eq.f32.partialorder %v572, 8.507059e+37
  %v574 = vand.u32 %v377, 2147483648
  %v575 = vor.u32 1.1754944e-38, %v574
  %v576 = vsel %vm573, %v575, %v571
  %v577 = vmul.f32 1.0, %v576
  %v578 = vrcp.pop %v378
  %v579 = vmul.f32 %v378, %v578
  %v580 = vsub.f32 1.0, %v579
  %v581 = vmul.f32 %v578, %v580
  %v582 = vadd.f32 %v578, %v581
  %vm583 = vweird.f32 %v378
  %vm584 = vweird.f32 %v578
  %vm585 = vmor %vm583, %vm584
  %v586 = vsel %vm585, %v578, %v582
  %v587 = vand.u32 2147483647, %v378
  %vm588 = vcmp.eq.f32.partialorder %v587, 8.507059e+37
  %v589 = vand.u32 %v378, 2147483648
  %v590 = vor.u32 1.1754944e-38, %v589
  %v591 = vsel %vm588, %v590, %v586
  %v592 = vmul.f32 1.0, %v591
  %v593 = vrcp.pop %v379
  %v594 = vmul.f32 %v379, %v593
  %v595 = vsub.f32 1.0, %v594
  %v596 = vmul.f32 %v593, %v595
  %v597 = vadd.f32 %v593, %v596
  %vm598 = vweird.f32 %v379
  %vm599 = vweird.f32 %v593
  %vm600 = vmor %vm598, %vm599
  %v601 = vsel %vm600, %v593, %v597
  %v602 = vand.u32 2147483647, %v379
  %vm603 = vcmp.eq.f32.partialorder %v602, 8.507059e+37
  %v604 = vand.u32 %v379, 2147483648
  %v605 = vor.u32 1.1754944e-38, %v604
  %v606 = vsel %vm603, %v605, %v601
  %v607 = vmul.f32 1.0, %v606
  %v608 = vrcp.pop %v380
  %v609 = vmul.f32 %v380, %v608
  %v610 = vsub.f32 1.0, %v609
  %v611 = vmul.f32 %v608, %v610
  %v612 = vadd.f32 %v608, %v611
  %vm613 = vweird.f32 %v380
  %vm614 = vweird.f32 %v608
  %vm615 = vmor %vm613, %vm614
  %v616 = vsel %vm615, %v608, %v612
  %v617 = vand.u32 2147483647, %v380
  %vm618 = vcmp.eq.f32.partialorder %v617, 8.507059e+37
  %v619 = vand.u32 %v380, 2147483648
  %v620 = vor.u32 1.1754944e-38, %v619
  %v621 = vsel %vm618, %v620, %v616
  %v622 = vmul.f32 1.0, %v621
  %v623 = vrcp.pop %v381
  %v624 = vmul.f32 %v381, %v623
  %v625 = vsub.f32 1.0, %v624
  %v626 = vmul.f32 %v623, %v625
  %v627 = vadd.f32 %v623, %v626
  %vm628 = vweird.f32 %v381
  %vm629 = vweird.f32 %v623
  %vm630 = vmor %vm628, %vm629
  %v631 = vsel %vm630, %v623, %v627
  %v632 = vand.u32 2147483647, %v381
  %vm633 = vcmp.eq.f32.partialorder %v632, 8.507059e+37
  %v634 = vand.u32 %v381, 2147483648
  %v635 = vor.u32 1.1754944e-38, %v634
  %v636 = vsel %vm633, %v635, %v631
  %v637 = vmul.f32 1.0, %v636
  %v638 = vrcp.pop %v382
  %v639 = vmul.f32 %v382, %v638
  %v640 = vsub.f32 1.0, %v639
  %v641 = vmul.f32 %v638, %v640
  %v642 = vadd.f32 %v638, %v641
  %vm643 = vweird.f32 %v382
  %vm644 = vweird.f32 %v638
  %vm645 = vmor %vm643, %vm644
  %v646 = vsel %vm645, %v638, %v642
  %v647 = vand.u32 2147483647, %v382
  %vm648 = vcmp.eq.f32.partialorder %v647, 8.507059e+37
  %v649 = vand.u32 %v382, 2147483648
  %v650 = vor.u32 1.1754944e-38, %v649
  %v651 = vsel %vm648, %v650, %v646
  %v652 = vmul.f32 1.0, %v651
  %v653 = vrcp.pop %v383
  %v654 = vmul.f32 %v383, %v653
  %v655 = vsub.f32 1.0, %v654
  %v656 = vmul.f32 %v653, %v655
  %v657 = vadd.f32 %v653, %v656
  %vm658 = vweird.f32 %v383
  %vm659 = vweird.f32 %v653
  %vm660 = vmor %vm658, %vm659
  %v661 = vsel %vm660, %v653, %v657
  %v662 = vand.u32 2147483647, %v383
  %vm663 = vcmp.eq.f32.partialorder %v662, 8.507059e+37
  %v664 = vand.u32 %v383, 2147483648
  %v665 = vor.u32 1.1754944e-38, %v664
  %v666 = vsel %vm663, %v665, %v661
  %v667 = vmul.f32 1.0, %v666
  %v668 = vrcp.pop %v384
  %v669 = vmul.f32 %v384, %v668
  %v670 = vsub.f32 1.0, %v669
  %v671 = vmul.f32 %v668, %v670
  %v672 = vadd.f32 %v668, %v671
  %vm673 = vweird.f32 %v384
  %vm674 = vweird.f32 %v668
  %vm675 = vmor %vm673, %vm674
  %v676 = vsel %vm675, %v668, %v672
  %v677 = vand.u32 2147483647, %v384
  %vm678 = vcmp.eq.f32.partialorder %v677, 8.507059e+37
  %v679 = vand.u32 %v384, 2147483648
  %v680 = vor.u32 1.1754944e-38, %v679
  %v681 = vsel %vm678, %v680, %v676
  %v682 = vmul.f32 1.0, %v681
  %v683 = vrcp.pop %v385
  %v684 = vmul.f32 %v385, %v683
  %v685 = vsub.f32 1.0, %v684
  %v686 = vmul.f32 %v683, %v685
  %v687 = vadd.f32 %v683, %v686
  %vm688 = vweird.f32 %v385
  %vm689 = vweird.f32 %v683
  %vm690 = vmor %vm688, %vm689
  %v691 = vsel %vm690, %v683, %v687
  %v692 = vand.u32 2147483647, %v385
  %vm693 = vcmp.eq.f32.partialorder %v692, 8.507059e+37
  %v694 = vand.u32 %v385, 2147483648
  %v695 = vor.u32 1.1754944e-38, %v694
  %v696 = vsel %vm693, %v695, %v691
  %v697 = vmul.f32 1.0, %v696
  %v698 = vrcp.pop %v386
  %v699 = vmul.f32 %v386, %v698
  %v700 = vsub.f32 1.0, %v699
  %v701 = vmul.f32 %v698, %v700
  %v702 = vadd.f32 %v698, %v701
  %vm703 = vweird.f32 %v386
  %vm704 = vweird.f32 %v698
  %vm705 = vmor %vm703, %vm704
  %v706 = vsel %vm705, %v698, %v702
  %v707 = vand.u32 2147483647, %v386
  %vm708 = vcmp.eq.f32.partialorder %v707, 8.507059e+37
  %v709 = vand.u32 %v386, 2147483648
  %v710 = vor.u32 1.1754944e-38, %v709
  %v711 = vsel %vm708, %v710, %v706
  %v712 = vmul.f32 1.0, %v711
  %v713 = vrcp.pop %v387
  %v714 = vmul.f32 %v387, %v713
  %v715 = vsub.f32 1.0, %v714
  %v716 = vmul.f32 %v713, %v715
  %v717 = vadd.f32 %v713, %v716
  %vm718 = vweird.f32 %v387
  %vm719 = vweird.f32 %v713
  %vm720 = vmor %vm718, %vm719
  %v721 = vsel %vm720, %v713, %v717
  %v722 = vand.u32 2147483647, %v387
  %vm723 = vcmp.eq.f32.partialorder %v722, 8.507059e+37
  %v724 = vand.u32 %v387, 2147483648
  %v725 = vor.u32 1.1754944e-38, %v724
  %v726 = vsel %vm723, %v725, %v721
  %v727 = vmul.f32 1.0, %v726
  %v728 = vrcp.pop %v388
  %v729 = vmul.f32 %v388, %v728
  %v730 = vsub.f32 1.0, %v729
  %v731 = vmul.f32 %v728, %v730
  %v732 = vadd.f32 %v728, %v731
  %vm733 = vweird.f32 %v388
  %vm734 = vweird.f32 %v728
  %vm735 = vmor %vm733, %vm734
  %v736 = vsel %vm735, %v728, %v732
  %v737 = vand.u32 2147483647, %v388
  %vm738 = vcmp.eq.f32.partialorder %v737, 8.507059e+37
  %v739 = vand.u32 %v388, 2147483648
  %v740 = vor.u32 1.1754944e-38, %v739
  %v741 = vsel %vm738, %v740, %v736
  %v742 = vmul.f32 1.0, %v741
  %v743 = vrcp.pop %v389
  %v744 = vmul.f32 %v389, %v743
  %v745 = vsub.f32 1.0, %v744
  %v746 = vmul.f32 %v743, %v745
  %v747 = vadd.f32 %v743, %v746
  %vm748 = vweird.f32 %v389
  %vm749 = vweird.f32 %v743
  %vm750 = vmor %vm748, %vm749
  %v751 = vsel %vm750, %v743, %v747
  %v752 = vand.u32 2147483647, %v389
  %vm753 = vcmp.eq.f32.partialorder %v752, 8.507059e+37
  %v754 = vand.u32 %v389, 2147483648
  %v755 = vor.u32 1.1754944e-38, %v754
  %v756 = vsel %vm753, %v755, %v751
  %v757 = vmul.f32 1.0, %v756
  %v758 = vrcp.pop %v390
  %v759 = vmul.f32 %v390, %v758
  %v760 = vsub.f32 1.0, %v759
  %v761 = vmul.f32 %v758, %v760
  %v762 = vadd.f32 %v758, %v761
  %vm763 = vweird.f32 %v390
  %vm764 = vweird.f32 %v758
  %vm765 = vmor %vm763, %vm764
  %v766 = vsel %vm765, %v758, %v762
  %v767 = vand.u32 2147483647, %v390
  %vm768 = vcmp.eq.f32.partialorder %v767, 8.507059e+37
  %v769 = vand.u32 %v390, 2147483648
  %v770 = vor.u32 1.1754944e-38, %v769
  %v771 = vsel %vm768, %v770, %v766
  %v772 = vmul.f32 1.0, %v771
  %v773 = vrcp.pop %v391
  %v774 = vmul.f32 %v391, %v773
  %v775 = vsub.f32 1.0, %v774
  %v776 = vmul.f32 %v773, %v775
  %v777 = vadd.f32 %v773, %v776
  %vm778 = vweird.f32 %v391
  %vm779 = vweird.f32 %v773
  %vm780 = vmor %vm778, %vm779
  %v781 = vsel %vm780, %v773, %v777
  %v782 = vand.u32 2147483647, %v391
  %vm783 = vcmp.eq.f32.partialorder %v782, 8.507059e+37
  %v784 = vand.u32 %v391, 2147483648
  %v785 = vor.u32 1.1754944e-38, %v784
  %v786 = vsel %vm783, %v785, %v781
  %v787 = vmul.f32 1.0, %v786
  %v788 = vrcp.pop %v392
  %v789 = vmul.f32 %v392, %v788
  %v790 = vsub.f32 1.0, %v789
  %v791 = vmul.f32 %v788, %v790
  %v792 = vadd.f32 %v788, %v791
  %vm793 = vweird.f32 %v392
  %vm794 = vweird.f32 %v788
  %vm795 = vmor %vm793, %vm794
  %v796 = vsel %vm795, %v788, %v792
  %v797 = vand.u32 2147483647, %v392
  %vm798 = vcmp.eq.f32.partialorder %v797, 8.507059e+37
  %v799 = vand.u32 %v392, 2147483648
  %v800 = vor.u32 1.1754944e-38, %v799
  %v801 = vsel %vm798, %v800, %v796
  %v802 = vmul.f32 1.0, %v801
  %v803 = vrcp.pop %v393
  %v804 = vmul.f32 %v393, %v803
  %v805 = vsub.f32 1.0, %v804
  %v806 = vmul.f32 %v803, %v805
  %v807 = vadd.f32 %v803, %v806
  %vm808 = vweird.f32 %v393
  %vm809 = vweird.f32 %v803
  %vm810 = vmor %vm808, %vm809
  %v811 = vsel %vm810, %v803, %v807
  %v812 = vand.u32 2147483647, %v393
  %vm813 = vcmp.eq.f32.partialorder %v812, 8.507059e+37
  %v814 = vand.u32 %v393, 2147483648
  %v815 = vor.u32 1.1754944e-38, %v814
  %v816 = vsel %vm813, %v815, %v811
  %v817 = vmul.f32 1.0, %v816
  %v818 = vrcp.pop %v394
  %v819 = vmul.f32 %v394, %v818
  %v820 = vsub.f32 1.0, %v819
  %v821 = vmul.f32 %v818, %v820
  %v822 = vadd.f32 %v818, %v821
  %vm823 = vweird.f32 %v394
  %vm824 = vweird.f32 %v818
  %vm825 = vmor %vm823, %vm824
  %v826 = vsel %vm825, %v818, %v822
  %v827 = vand.u32 2147483647, %v394
  %vm828 = vcmp.eq.f32.partialorder %v827, 8.507059e+37
  %v829 = vand.u32 %v394, 2147483648
  %v830 = vor.u32 1.1754944e-38, %v829
  %v831 = vsel %vm828, %v830, %v826
  %v832 = vmul.f32 1.0, %v831
  %v833 = vrcp.pop %v395
  %v834 = vmul.f32 %v395, %v833
  %v835 = vsub.f32 1.0, %v834
  %v836 = vmul.f32 %v833, %v835
  %v837 = vadd.f32 %v833, %v836
  %vm838 = vweird.f32 %v395
  %vm839 = vweird.f32 %v833
  %vm840 = vmor %vm838, %vm839
  %v841 = vsel %vm840, %v833, %v837
  %v842 = vand.u32 2147483647, %v395
  %vm843 = vcmp.eq.f32.partialorder %v842, 8.507059e+37
  %v844 = vand.u32 %v395, 2147483648
  %v845 = vor.u32 1.1754944e-38, %v844
  %v846 = vsel %vm843, %v845, %v841
  %v847 = vmul.f32 1.0, %v846
  %v848 = vrcp.pop %v396
  %v849 = vmul.f32 %v396, %v848
  %v850 = vsub.f32 1.0, %v849
  %v851 = vmul.f32 %v848, %v850
  %v852 = vadd.f32 %v848, %v851
  %vm853 = vweird.f32 %v396
  %vm854 = vweird.f32 %v848
  %vm855 = vmor %vm853, %vm854
  %v856 = vsel %vm855, %v848, %v852
  %v857 = vand.u32 2147483647, %v396
  %vm858 = vcmp.eq.f32.partialorder %v857, 8.507059e+37
  %v859 = vand.u32 %v396, 2147483648
  %v860 = vor.u32 1.1754944e-38, %v859
  %v861 = vsel %vm858, %v860, %v856
  %v862 = vmul.f32 1.0, %v861
  %v863 = vrcp.pop %v397
  %v864 = vmul.f32 %v397, %v863
  %v865 = vsub.f32 1.0, %v864
  %v866 = vmul.f32 %v863, %v865
  %v867 = vadd.f32 %v863, %v866
  %vm868 = vweird.f32 %v397
  %vm869 = vweird.f32 %v863
  %vm870 = vmor %vm868, %vm869
  %v871 = vsel %vm870, %v863, %v867
  %v872 = vand.u32 2147483647, %v397
  %vm873 = vcmp.eq.f32.partialorder %v872, 8.507059e+37
  %v874 = vand.u32 %v397, 2147483648
  %v875 = vor.u32 1.1754944e-38, %v874
  %v876 = vsel %vm873, %v875, %v871
  %v877 = vmul.f32 1.0, %v876
  %v878 = vmul.f32 %v175, %v412
  %v879 = vmul.f32 %v178, %v427
  %v880 = vmul.f32 %v181, %v442
  %v881 = vmul.f32 %v184, %v457
  %v882 = vmul.f32 %v187, %v472
  %v883 = vmul.f32 %v190, %v487
  %v884 = vmul.f32 %v193, %v502
  %v885 = vmul.f32 %v196, %v517
  %v886 = vmul.f32 %v199, %v532
  %v887 = vmul.f32 %v202, %v547
  %v888 = vmul.f32 %v205, %v562
  %v889 = vmul.f32 %v208, %v577
  %v890 = vmul.f32 %v211, %v592
  %v891 = vmul.f32 %v214, %v607
  %v892 = vmul.f32 %v217, %v622
  %v893 = vmul.f32 %v220, %v637
  %v894 = vmul.f32 %v223, %v652
  %v895 = vmul.f32 %v226, %v667
  %v896 = vmul.f32 %v229, %v682
  %v897 = vmul.f32 %v232, %v697
  %v898 = vmul.f32 %v235, %v712
  %v899 = vmul.f32 %v238, %v727
  %v900 = vmul.f32 %v241, %v742
  %v901 = vmul.f32 %v244, %v757
  %v902 = vmul.f32 %v247, %v772
  %v903 = vmul.f32 %v250, %v787
  %v904 = vmul.f32 %v253, %v802
  %v905 = vmul.f32 %v256, %v817
  %v906 = vmul.f32 %v259, %v832
  %v907 = vmul.f32 %v262, %v847
  %v908 = vmul.f32 %v265, %v862
  %v909 = vmul.f32 %v268, %v877
  %v910 = vld [vmem:[%s3] sm:$0xff]
  %v911 = vld [vmem:[%s3 + $0x8] sm:$0xff]
  %v912 = vld [vmem:[%s3 + $0x10] sm:$0xff]
  %v913 = vld [vmem:[%s3 + $0x18] sm:$0xff]
  %v914 = vld [vmem:[%s3 + $0x20] sm:$0xff]
  %v915 = vld [vmem:[%s3 + $0x28] sm:$0xff]
  %v916 = vld [vmem:[%s3 + $0x30] sm:$0xff]
  %v917 = vld [vmem:[%s3 + $0x38] sm:$0xff]
  %v918 = vld [vmem:[%s4] sm:$0x1]
  %v920 = vperm.slane %v918, 0
  %vm922 = vcmask 523264
  %v924 = vsel %vm922, %v878, 0
  %v927 = vsel %vm922, %v879, 0
  %v930 = vsel %vm922, %v880, 0
  %v933 = vsel %vm922, %v881, 0
  %v936 = vsel %vm922, %v882, 0
  %v939 = vsel %vm922, %v883, 0
  %v942 = vsel %vm922, %v884, 0
  %v945 = vsel %vm922, %v885, 0
  %v948 = vsel %vm922, %v886, 0
  %v951 = vsel %vm922, %v887, 0
  %v954 = vsel %vm922, %v888, 0
  %v957 = vsel %vm922, %v889, 0
  %v960 = vsel %vm922, %v890, 0
  %v963 = vsel %vm922, %v891, 0
  %v966 = vsel %vm922, %v892, 0
  %v969 = vsel %vm922, %v893, 0
  %v972 = vsel %vm922, %v894, 0
  %v975 = vsel %vm922, %v895, 0
  %v978 = vsel %vm922, %v896, 0
  %v981 = vsel %vm922, %v897, 0
  %v984 = vsel %vm922, %v898, 0
  %v987 = vsel %vm922, %v899, 0
  %v990 = vsel %vm922, %v900, 0
  %v993 = vsel %vm922, %v901, 0
  %v996 = vsel %vm922, %v902, 0
  %v999 = vsel %vm922, %v903, 0
  %v1002 = vsel %vm922, %v904, 0
  %v1005 = vsel %vm922, %v905, 0
  %v1008 = vsel %vm922, %v906, 0
  %v1011 = vsel %vm922, %v907, 0
  %v1014 = vsel %vm922, %v908, 0
  %v1017 = vsel %vm922, %v909, 0
  %1019 = vmatpush.msra.mxu0 0.0
  %1020 = vmatpush.msra.mxu0 0.0
  %1021 = vmatpush.msra.mxu0 0.0
  %1022 = vmatpush.msra.mxu0 0.0
  %1023 = vmatpush.msra.mxu0 0.0
  %1024 = vmatpush.msra.mxu0 0.0
  %1025 = vmatpush.msra.mxu0 0.0
  %1026 = vmatpush.msra.mxu0 0.0
  %1027 = vmatpush.msra.mxu0 %v917
  %1028 = vmatpush.msra.mxu0 %v916
  %1029 = vmatpush.msra.mxu0 %v915
  %1030 = vmatpush.msra.mxu0 %v914
  %1031 = vmatpush.msra.mxu0 %v913
  %1032 = vmatpush.msra.mxu0 %v912
  %1033 = vmatpush.msra.mxu0 %v911
  %1034 = vmatpush.msra.mxu0 %v910
  %1035 = vmatmul.f32.gmra.mxu0 %v924
  %v1036 = vpop.f32.mrf.mxu0
  %v1037 = vadd.f32 %v920, %v1036
  %1038 = vmatmul.f32.gmra.mxu0 %v927
  %v1039 = vpop.f32.mrf.mxu0
  %v1040 = vadd.f32 %v920, %v1039
  %1041 = vmatmul.f32.gmra.mxu0 %v930
  %v1042 = vpop.f32.mrf.mxu0
  %v1043 = vadd.f32 %v920, %v1042
  %1044 = vmatmul.f32.gmra.mxu0 %v933
  %v1045 = vpop.f32.mrf.mxu0
  %v1046 = vadd.f32 %v920, %v1045
  %1047 = vmatmul.f32.gmra.mxu0 %v936
  %v1048 = vpop.f32.mrf.mxu0
  %v1049 = vadd.f32 %v920, %v1048
  %1050 = vmatmul.f32.gmra.mxu0 %v939
  %v1051 = vpop.f32.mrf.mxu0
  %v1052 = vadd.f32 %v920, %v1051
  %1053 = vmatmul.f32.gmra.mxu0 %v942
  %v1054 = vpop.f32.mrf.mxu0
  %v1055 = vadd.f32 %v920, %v1054
  %1056 = vmatmul.f32.gmra.mxu0 %v945
  %v1057 = vpop.f32.mrf.mxu0
  %v1058 = vadd.f32 %v920, %v1057
  %1059 = vmatmul.f32.gmra.mxu0 %v948
  %v1060 = vpop.f32.mrf.mxu0
  %v1061 = vadd.f32 %v920, %v1060
  %1062 = vmatmul.f32.gmra.mxu0 %v951
  %v1063 = vpop.f32.mrf.mxu0
  %v1064 = vadd.f32 %v920, %v1063
  %1065 = vmatmul.f32.gmra.mxu0 %v954
  %v1066 = vpop.f32.mrf.mxu0
  %v1067 = vadd.f32 %v920, %v1066
  %1068 = vmatmul.f32.gmra.mxu0 %v957
  %v1069 = vpop.f32.mrf.mxu0
  %v1070 = vadd.f32 %v920, %v1069
  %1071 = vmatmul.f32.gmra.mxu0 %v960
  %v1072 = vpop.f32.mrf.mxu0
  %v1073 = vadd.f32 %v920, %v1072
  %1074 = vmatmul.f32.gmra.mxu0 %v963
  %v1075 = vpop.f32.mrf.mxu0
  %v1076 = vadd.f32 %v920, %v1075
  %1077 = vmatmul.f32.gmra.mxu0 %v966
  %v1078 = vpop.f32.mrf.mxu0
  %v1079 = vadd.f32 %v920, %v1078
  %1080 = vmatmul.f32.gmra.mxu0 %v969
  %v1081 = vpop.f32.mrf.mxu0
  %v1082 = vadd.f32 %v920, %v1081
  %1083 = vmatmul.f32.gmra.mxu0 %v972
  %v1084 = vpop.f32.mrf.mxu0
  %v1085 = vadd.f32 %v920, %v1084
  %1086 = vmatmul.f32.gmra.mxu0 %v975
  %v1087 = vpop.f32.mrf.mxu0
  %v1088 = vadd.f32 %v920, %v1087
  %1089 = vmatmul.f32.gmra.mxu0 %v978
  %v1090 = vpop.f32.mrf.mxu0
  %v1091 = vadd.f32 %v920, %v1090
  %1092 = vmatmul.f32.gmra.mxu0 %v981
  %v1093 = vpop.f32.mrf.mxu0
  %v1094 = vadd.f32 %v920, %v1093
  %1095 = vmatmul.f32.gmra.mxu0 %v984
  %v1096 = vpop.f32.mrf.mxu0
  %v1097 = vadd.f32 %v920, %v1096
  %1098 = vmatmul.f32.gmra.mxu0 %v987
  %v1099 = vpop.f32.mrf.mxu0
  %v1100 = vadd.f32 %v920, %v1099
  %1101 = vmatmul.f32.gmra.mxu0 %v990
  %v1102 = vpop.f32.mrf.mxu0
  %v1103 = vadd.f32 %v920, %v1102
  %1104 = vmatmul.f32.gmra.mxu0 %v993
  %v1105 = vpop.f32.mrf.mxu0
  %v1106 = vadd.f32 %v920, %v1105
  %1107 = vmatmul.f32.gmra.mxu0 %v996
  %v1108 = vpop.f32.mrf.mxu0
  %v1109 = vadd.f32 %v920, %v1108
  %1110 = vmatmul.f32.gmra.mxu0 %v999
  %v1111 = vpop.f32.mrf.mxu0
  %v1112 = vadd.f32 %v920, %v1111
  %1113 = vmatmul.f32.gmra.mxu0 %v1002
  %v1114 = vpop.f32.mrf.mxu0
  %v1115 = vadd.f32 %v920, %v1114
  %1116 = vmatmul.f32.gmra.mxu0 %v1005
  %v1117 = vpop.f32.mrf.mxu0
  %v1118 = vadd.f32 %v920, %v1117
  %1119 = vmatmul.f32.gmra.mxu0 %v1008
  %v1120 = vpop.f32.mrf.mxu0
  %v1121 = vadd.f32 %v920, %v1120
  %1122 = vmatmul.f32.gmra.mxu0 %v1011
  %v1123 = vpop.f32.mrf.mxu0
  %v1124 = vadd.f32 %v920, %v1123
  %1125 = vmatmul.f32.gmra.mxu0 %v1014
  %v1126 = vpop.f32.mrf.mxu0
  %v1127 = vadd.f32 %v920, %v1126
  %1128 = vmatmul.f32.gmra.mxu0 %v1017
  %v1129 = vpop.f32.mrf.mxu0
  %v1130 = vadd.f32 %v920, %v1129
  %1131 = vdwg.mxu0
  %1132 = vst.msk [vmem:[%s5] sm:$0xff] %vm60, %v1037
  %1133 = vst.msk [vmem:[%s5 + $0x8] sm:$0xff] %vm60, %v1040
  %1134 = vst.msk [vmem:[%s5 + $0x10] sm:$0xff] %vm60, %v1043
  %1135 = vst.msk [vmem:[%s5 + $0x18] sm:$0xff] %vm60, %v1046
  %1136 = vst.msk [vmem:[%s5 + $0x20] sm:$0xff] %vm60, %v1049
  %1137 = vst.msk [vmem:[%s5 + $0x28] sm:$0xff] %vm60, %v1052
  %1138 = vst.msk [vmem:[%s5 + $0x30] sm:$0xff] %vm60, %v1055
  %1139 = vst.msk [vmem:[%s5 + $0x38] sm:$0xff] %vm60, %v1058
  %1140 = vst.msk [vmem:[%s5 + $0x40] sm:$0xff] %vm60, %v1061
  %1141 = vst.msk [vmem:[%s5 + $0x48] sm:$0xff] %vm60, %v1064
  %1142 = vst.msk [vmem:[%s5 + $0x50] sm:$0xff] %vm60, %v1067
  %1143 = vst.msk [vmem:[%s5 + $0x58] sm:$0xff] %vm60, %v1070
  %1144 = vst.msk [vmem:[%s5 + $0x60] sm:$0xff] %vm60, %v1073
  %1145 = vst.msk [vmem:[%s5 + $0x68] sm:$0xff] %vm60, %v1076
  %1146 = vst.msk [vmem:[%s5 + $0x70] sm:$0xff] %vm60, %v1079
  %1147 = vst.msk [vmem:[%s5 + $0x78] sm:$0xff] %vm60, %v1082
  %1148 = vst.msk [vmem:[%s5 + $0x80] sm:$0xff] %vm60, %v1085
  %1149 = vst.msk [vmem:[%s5 + $0x88] sm:$0xff] %vm60, %v1088
  %1150 = vst.msk [vmem:[%s5 + $0x90] sm:$0xff] %vm60, %v1091
  %1151 = vst.msk [vmem:[%s5 + $0x98] sm:$0xff] %vm60, %v1094
  %1152 = vst.msk [vmem:[%s5 + $0xa0] sm:$0xff] %vm60, %v1097
  %1153 = vst.msk [vmem:[%s5 + $0xa8] sm:$0xff] %vm60, %v1100
  %1154 = vst.msk [vmem:[%s5 + $0xb0] sm:$0xff] %vm60, %v1103
  %1155 = vst.msk [vmem:[%s5 + $0xb8] sm:$0xff] %vm60, %v1106
  %1156 = vst.msk [vmem:[%s5 + $0xc0] sm:$0xff] %vm60, %v1109
  %1157 = vst.msk [vmem:[%s5 + $0xc8] sm:$0xff] %vm60, %v1112
  %1158 = vst.msk [vmem:[%s5 + $0xd0] sm:$0xff] %vm60, %v1115
  %1159 = vst.msk [vmem:[%s5 + $0xd8] sm:$0xff] %vm60, %v1118
  %1160 = vst.msk [vmem:[%s5 + $0xe0] sm:$0xff] %vm60, %v1121
  %1161 = vst.msk [vmem:[%s5 + $0xe8] sm:$0xff] %vm60, %v1124
  %1162 = vst.msk [vmem:[%s5 + $0xf0] sm:$0xff] %vm60, %v1127
  %1163 = vst.msk [vmem:[%s5 + $0xf8] sm:$0xff] %vm60, %v1130
  // Predicated region
  $region22: #{tpu_custom_call.1} parent=0 // pred_check
    _
  $region23: #{tpu_custom_call.1} parent=0 // pred_check_branch
    %1165 = sbr.rel (0) target = $region25
  $region24: #{tpu_custom_call.1} parent=0 // pred_region
    _
  $region25: #{tpu_custom_call.1} parent=0 // pred_fallthru
    _
  // Predicated region
  $region26: #{tpu_custom_call.1} parent=0 // pred_check
    _
  $region27: #{tpu_custom_call.1} parent=0 // pred_check_branch
    %1167 = sbr.rel (0) target = $region29
  $region28: #{tpu_custom_call.1} parent=0 // pred_region
    _
  $region29: #{tpu_custom_call.1} parent=0 // pred_fallthru
    _

</llo_original>
